<compile_context>
chip_gen: v6e
topology: v6e:2x2x1
jax: 0.10.0
libtpu: 0.0.40
codegen_flags: <defaults>
</compile_context>

<pallas_src>
import functools

import jax
import jax.numpy as jnp
from jax import lax
from jax.experimental import pallas as pl
from jax.experimental.pallas import tpu as pltpu


# ----------------------------- Pallas kernel ------------------------------ #
def _matmul_bias_kernel(lid_ref, x_ref, w_ref, b_ref, o_ref):
    # lid_ref : (num_m_tiles,) int32 SMEM (scalar prefetch, used by index_maps)
    # x_ref   : (tm, K)      bf16 im2col patch tile (rows of one level)
    # w_ref   : (K, TC)      bf16 fused cls+reg weights of that level (Cout tile)
    # b_ref   : (1, TC)      f32  fused bias (Cout tile)
    # o_ref   : (tm, TC)     f32  output tile
    del lid_ref
    acc = jnp.dot(x_ref[...], w_ref[...], preferred_element_type=jnp.float32)
    o_ref[...] = (acc + b_ref[...]).astype(o_ref.dtype)


def _fused_head_matmul(xcol, w_stacked, b_stacked, level_ids, tm):
    """One fused matmul+bias over all levels.

    xcol:      (M_total, K_pad)        bf16, levels concatenated along M
    w_stacked: (L, K_pad, C_total_pad) bf16
    b_stacked: (L, 1, C_total_pad)     f32
    level_ids: (M_total // tm,)        int32  level id of each M tile
    """
    m_total, k_pad = xcol.shape
    _, _, c_total = w_stacked.shape
    num_m = m_total // tm
    # 256-wide Cout tiles match v6e/v7x MXU width; 128 otherwise (v5e runs
    # a 256 tile as two serialized 128 passes anyway, so 128 is never worse).
    tile_c = 256 if c_total % 256 == 0 else 128
    num_c = c_total // tile_c

    cost = pl.CostEstimate(
        flops=2 * m_total * k_pad * c_total,
        transcendentals=0,
        bytes_accessed=(xcol.size * 2 + w_stacked.size * 2
                        + b_stacked.size * 4 + m_total * c_total * 4))

    # Double-buffered per-step working set; only raise the scoped VMEM limit
    # when the default (32 MiB) would not fit (keeps v7x's 64 MiB safe).
    est = 2 * (tm * k_pad * 2 + k_pad * tile_c * 2 + tile_c * 4
               + tm * tile_c * 4)
    cp_kwargs = dict(dimension_semantics=("parallel", "parallel"))
    if est > 24 * 1024 * 1024:
        cp_kwargs["vmem_limit_bytes"] = int(min(2 * est, 100 * 1024 * 1024))

    grid_spec = pltpu.PrefetchScalarGridSpec(
        num_scalar_prefetch=1,
        grid=(num_m, num_c),          # Cout tiles innermost -> x tile reused
        in_specs=[
            pl.BlockSpec((tm, k_pad), lambda m, j, lid: (m, 0)),
            pl.BlockSpec((None, k_pad, tile_c),
                         lambda m, j, lid: (lid[m], 0, j)),
            pl.BlockSpec((None, 1, tile_c),
                         lambda m, j, lid: (lid[m], 0, j)),
        ],
        out_specs=pl.BlockSpec((tm, tile_c), lambda m, j, lid: (m, j)),
    )

    return pl.pallas_call(
        _matmul_bias_kernel,
        out_shape=jax.ShapeDtypeStruct((m_total, c_total), jnp.float32),
        grid_spec=grid_spec,
        compiler_params=pltpu.CompilerParams(**cp_kwargs),
        cost_estimate=cost,
    )(level_ids, xcol, w_stacked, b_stacked)


# --------------------------- parameter creation ---------------------------- #
def _round_up(x, m):
    return ((x + m - 1) // m) * m


def _xavier_uniform_conv(key, cin, cout, k=3):
    # matches torch.nn.init.xavier_uniform_ on a (cout, cin, k, k) conv weight
    fan_in = cin * k * k
    fan_out = cout * k * k
    bound = (6.0 / (fan_in + fan_out)) ** 0.5
    return jax.random.uniform(key, (cout, cin, k, k), jnp.float32,
                              minval=-bound, maxval=bound)


def _pack_conv_weight(w_oikk):
    # (Cout, Cin, 3, 3) -> (9*Cin, Cout), row index (ky*3 + kx)*Cin + ci
    cout, cin, kh, kw = w_oikk.shape
    return jnp.transpose(w_oikk, (2, 3, 1, 0)).reshape(kh * kw * cin, cout)


def make_head_params(key, num_classes, in_channels, aspect_ratios):
    L = len(in_channels)
    num_anchors = [len(aspect_ratios[i]) * 2 + 2 for i in range(L)]
    cls_outs = [num_anchors[i] * num_classes for i in range(L)]
    reg_outs = [num_anchors[i] * 4 for i in range(L)]
    cls_pad = _round_up(max(cls_outs), 128)      # cls columns, lane aligned
    reg_pad = _round_up(max(reg_outs), 128)      # reg starts lane-aligned
    k_pad = _round_up(max(9 * c for c in in_channels), 8)
    c_total = cls_pad + reg_pad

    levels, w_stack, b_stack = [], [], []
    for i, cin in enumerate(in_channels):
        key, k_rw, k_rb, k_cw, k_cb = jax.random.split(key, 5)
        cls_w = _xavier_uniform_conv(k_cw, cin, cls_outs[i])
        reg_w = _xavier_uniform_conv(k_rw, cin, reg_outs[i])
        cls_b = jax.random.uniform(k_cb, (cls_outs[i],), jnp.float32, -0.05, 0.05)
        reg_b = jax.random.uniform(k_rb, (reg_outs[i],), jnp.float32, -0.05, 0.05)

        w_lvl = jnp.zeros((k_pad, c_total), jnp.float32)
        w_lvl = w_lvl.at[:9 * cin, :cls_outs[i]].set(_pack_conv_weight(cls_w))
        w_lvl = w_lvl.at[:9 * cin, cls_pad:cls_pad + reg_outs[i]].set(
            _pack_conv_weight(reg_w))
        b_lvl = jnp.zeros((1, c_total), jnp.float32)
        b_lvl = b_lvl.at[0, :cls_outs[i]].set(cls_b)
        b_lvl = b_lvl.at[0, cls_pad:cls_pad + reg_outs[i]].set(reg_b)

        w_stack.append(w_lvl)
        b_stack.append(b_lvl)
        levels.append(dict(cls_w_oikk=cls_w, reg_w_oikk=reg_w,
                           cls_b=cls_b, reg_b=reg_b))

    w_stacked = jnp.stack(w_stack).astype(jnp.bfloat16)   # (L, k_pad, c_total)
    b_stacked = jnp.stack(b_stack)                        # (L, 1, c_total) f32
    meta = dict(splits=tuple(zip(cls_outs, reg_outs)),
                cls_pad=cls_pad, k_pad=k_pad)
    return levels, w_stacked, b_stacked, meta


# ------------------------------ Head forward ------------------------------- #
@functools.partial(jax.jit, static_argnames=("splits", "cls_pad", "k_pad"))
def head_forward(feats_nchw, w_stacked, b_stacked, *, splits, cls_pad, k_pad):
    """feats_nchw: tuple of (N, C, H, W). Returns (cls_scores, bbox_preds)
    as lists of NHWC arrays — same semantics as the PyTorch module."""
    m_sizes = [f.shape[0] * f.shape[2] * f.shape[3] for f in feats_nchw]
    tm = min(1024, _round_up(max(m_sizes), 8))            # M tile (VMEM-safe)

    xcols, level_ids, meta = [], [], []
    m_start = 0
    for lvl, feat in enumerate(feats_nchw):
        N, Cin, H, W = feat.shape
        # NCHW -> NHWC once per level, bf16 cast, zero pad, im2col.
        # TODO(synk): accept NHWC upstream / build patches in-kernel at scale.
        x = jnp.transpose(feat, (0, 2, 3, 1)).astype(jnp.bfloat16)
        xp = jnp.pad(x, ((0, 0), (1, 1), (1, 1), (0, 0)))
        cols = [xp[:, dy:dy + H, dx:dx + W, :]
                for dy in range(3) for dx in range(3)]
        xcol = jnp.concatenate(cols, axis=-1).reshape(N * H * W, 9 * Cin)
        M = N * H * W
        Mp = _round_up(M, tm)
        xcol = jnp.pad(xcol, ((0, Mp - M), (0, k_pad - 9 * Cin)))
        xcols.append(xcol)
        level_ids += [lvl] * (Mp // tm)
        meta.append((m_start, M, N, H, W))
        m_start += Mp

    xcol_all = jnp.concatenate(xcols, axis=0) if len(xcols) > 1 else xcols[0]
    level_ids = jnp.asarray(level_ids, jnp.int32)

    out = _fused_head_matmul(xcol_all, w_stacked, b_stacked, level_ids, tm)

    cls_scores, bbox_preds = [], []
    for (m0, M, N, H, W), (cls_out, reg_out) in zip(meta, splits):
        blk = out[m0:m0 + M]
        cls_scores.append(blk[:, :cls_out].reshape(N, H, W, cls_out))
        bbox_preds.append(
            blk[:, cls_pad:cls_pad + reg_out].reshape(N, H, W, reg_out))
    return cls_scores, bbox_preds


# ----------------------------- reference check ----------------------------- #
def _conv_ref_nchw(x_nchw, w_oikk, b):
    # reference uses the same bf16-rounded inputs the kernel consumes
    xq = x_nchw.astype(jnp.bfloat16).astype(jnp.float32)
    wq = w_oikk.astype(jnp.bfloat16).astype(jnp.float32)
    out = lax.conv_general_dilated(
        xq, wq, window_strides=(1, 1), padding=((1, 1), (1, 1)),
        dimension_numbers=("NCHW", "OIHW", "NCHW"))
    out = out + b[None, :, None, None]
    return jnp.transpose(out, (0, 2, 3, 1))             # permute(0,2,3,1)


if __name__ == "__main__":
    key = jax.random.PRNGKey(0)

    # small, module-consistent config
    num_classes = 81
    in_channels = [32, 32, 32]
    aspect_ratios = ([2], [2, 3], [2, 3], [2, 3], [2], [2])
    spatial = [8, 4, 2]
    batch = 2

    key, kp = jax.random.split(key)
    levels, w_stacked, b_stacked, meta = make_head_params(
        kp, num_classes, in_channels, aspect_ratios)

    feats = []
    for cin, s in zip(in_channels, spatial):
        key, kf = jax.random.split(key)
        feats.append(jax.random.normal(kf, (batch, cin, s, s), jnp.float32))

    cls_scores, bbox_preds = head_forward(
        tuple(feats), w_stacked, b_stacked,
        splits=meta["splits"], cls_pad=meta["cls_pad"], k_pad=meta["k_pad"])
    jax.block_until_ready((cls_scores, bbox_preds))

    # verify against plain-JAX conv reference (same bf16-rounded inputs)
    for feat, p, cls, reg in zip(feats, levels, cls_scores, bbox_preds):
        cls_ref = _conv_ref_nchw(feat, p["cls_w_oikk"], p["cls_b"])
        reg_ref = _conv_ref_nchw(feat, p["reg_w_oikk"], p["reg_b"])
        assert jnp.allclose(cls, cls_ref, atol=2e-3, rtol=2e-3), "cls mismatch"
        assert jnp.allclose(reg, reg_ref, atol=2e-3, rtol=2e-3), "reg mismatch"

    print("KERNEL_OK")
</pallas_src>

<mosaic_0001>
module attributes {stable_mosaic.version = 11 : i64} {
  func.func @_matmul_bias_kernel(%arg0: i32, %arg1: i32, %arg2: memref<3xi32, #tpu.memory_space<smem>>, %arg3: memref<128x288xbf16, #tpu.memory_space<vmem>>, %arg4: memref<1x288x128xbf16, #tpu.memory_space<vmem>>, %arg5: memref<1x1x128xf32, #tpu.memory_space<vmem>>, %arg6: memref<128x128xf32, #tpu.memory_space<vmem>>) attributes {dimension_semantics = [#tpu.dimension_semantics<parallel>, #tpu.dimension_semantics<parallel>], iteration_bounds = array<i64: 3, 5>, scalar_prefetch = 1 : i64, scratch_operands = 0 : i64, tpu.core_type = #tpu.core_type<tc>, window_params = [{transform_indices = @transform_0, window_bounds = array<i64: 128, 288>}, {transform_indices = @transform_1, window_bounds = array<i64: 1, 288, 128>}, {transform_indices = @transform_2, window_bounds = array<i64: 1, 1, 128>}, {transform_indices = @transform_3, window_bounds = array<i64: 128, 128>}]} {
    %c0 = arith.constant 0 : index
    %c0_0 = arith.constant 0 : index
    %0 = vector.load %arg3[%c0, %c0_0] : memref<128x288xbf16, #tpu.memory_space<vmem>>, vector<128x288xbf16>
    %c0_1 = arith.constant 0 : index
    %c0_2 = arith.constant 0 : index
    %c0_3 = arith.constant 0 : index
    %1 = vector.load %arg4[%c0_1, %c0_2, %c0_3] : memref<1x288x128xbf16, #tpu.memory_space<vmem>>, vector<1x288x128xbf16>
    %2 = vector.shape_cast %1 : vector<1x288x128xbf16> to vector<288x128xbf16>
    %cst = arith.constant dense<0.000000e+00> : vector<128x128xf32>
    %3 = tpu.matmul %0, %2, %cst {dimension_numbers = #tpu.dot_dimension_numbers<[1], [0], [0], [1], [0, 0, 1, 1], [], []>} : vector<128x288xbf16>, vector<288x128xbf16>, vector<128x128xf32> -> vector<128x128xf32>
    %c0_4 = arith.constant 0 : index
    %c0_5 = arith.constant 0 : index
    %c0_6 = arith.constant 0 : index
    %4 = vector.load %arg5[%c0_4, %c0_5, %c0_6] : memref<1x1x128xf32, #tpu.memory_space<vmem>>, vector<1x1x128xf32>
    %5 = vector.shape_cast %4 : vector<1x1x128xf32> to vector<1x128xf32>
    %6 = vector.broadcast %5 : vector<1x128xf32> to vector<128x128xf32>
    %7 = arith.addf %3, %6 : vector<128x128xf32>
    %c0_7 = arith.constant 0 : index
    %c0_8 = arith.constant 0 : index
    %8 = vector.load %arg6[%c0_7, %c0_8] : memref<128x128xf32, #tpu.memory_space<vmem>>, vector<128x128xf32>
    tpu.vector_store %arg6[%c0_7, %c0_8], %7 {strides = array<i32>} : memref<128x128xf32, #tpu.memory_space<vmem>>, vector<128x128xf32>,
    return
  }
  func.func @transform_0(%arg0: i32, %arg1: i32, %arg2: memref<3xi32, #tpu.memory_space<smem>>) -> (i32, i32) {
    %c0_i32 = arith.constant 0 : i32
    %c0_i32_0 = arith.constant 0 : i32
    return %arg0, %c0_i32 : i32, i32
  }
  func.func @transform_1(%arg0: i32, %arg1: i32, %arg2: memref<3xi32, #tpu.memory_space<smem>>) -> (i32, i32, i32) {
    %0 = arith.index_cast %arg0 : i32 to index
    %1 = memref.load %arg2[%0] : memref<3xi32, #tpu.memory_space<smem>>
    %c0_i32 = arith.constant 0 : i32
    %c0_i32_0 = arith.constant 0 : i32
    return %1, %c0_i32, %arg1 : i32, i32, i32
  }
  func.func @transform_2(%arg0: i32, %arg1: i32, %arg2: memref<3xi32, #tpu.memory_space<smem>>) -> (i32, i32, i32) {
    %0 = arith.index_cast %arg0 : i32 to index
    %1 = memref.load %arg2[%0] : memref<3xi32, #tpu.memory_space<smem>>
    %c0_i32 = arith.constant 0 : i32
    %c0_i32_0 = arith.constant 0 : i32
    return %1, %c0_i32, %arg1 : i32, i32, i32
  }
  func.func @transform_3(%arg0: i32, %arg1: i32, %arg2: memref<3xi32, #tpu.memory_space<smem>>) -> (i32, i32) {
    %c0_i32 = arith.constant 0 : i32
    return %arg0, %arg1 : i32, i32
  }
}

</mosaic_0001>

<llo_original>
// kernel: head_forward.1
$region0: #{head_forward.1}
  #allocation0 [shape = 'u32[]', space=smem, size = 0x4, offset = 0x4, fixed_abs, tag = 'smem constant byte address 0x4 - core index']
  #allocation1 [shape = 'u32[144,128]{1,0:T(1,128)}', space=vmem, size = 0x12000, scoped, tag = 'internal scratch']
  #allocation2 [shape = 's32[1]{0}', space=sflag, size = 0x4, scoped, tag = 'scoped memory for head_forward.1']
  #allocation3 [shape = 'u8[512]{0}', space=smem, size = 0x200, scoped, tag = 'prefetched SMEM operand 0']
  %s0 = inlined_call_operand.vmem [shape: s32[3], index: 0, kind: input, shape index: {}]
  %s1 = inlined_call_operand.vmem [shape: bf16[384,288], index: 1, kind: input, shape index: {}]
  %s2 = inlined_call_operand.vmem [shape: bf16[3,288,640], index: 2, kind: input, shape index: {}]
  %s3 = inlined_call_operand.vmem [shape: f32[3,1,640], index: 3, kind: input, shape index: {}]
  %s4 = inlined_call_operand.vmem [shape: f32[384,640], index: 4, kind: output, shape index: {}]
  %s5 = sld [smem:[#allocation0]]
  $region120: #{head_forward.1} parent=0
    _
  %s7 = ssub.s32 1, %s5
  %s8 = scalar_select 0, %s7, %s5
  %s9 = sshll.u32 %s0, 4
  %s10 = int_to_ptr.vmem [resolvable:$true] %s9
  %12 = dma.vmem_to_smem %s10, 16, [#allocation3], [#allocation2]
  %13 = dma.done [#allocation2], 16
  %14 = sfence
  $region1: #{head_forward.1} parent=0
    #allocation4 [shape = 'u8[147456]{0}', space=vmem, size = 0x24000, scoped, tag = 'input window, operand 2']
    #allocation5 [shape = 'u8[131072]{0}', space=vmem, size = 0x20000, scoped, tag = 'output window, operand 0']
    loop: start=0, step=1, limit=17
    $region2: #{head_forward.1} parent=1 // loop_pre_header
      _
    $region3: #{head_forward.1} parent=1 // loop_header
      %s16 = sphi 0, %s20
      %p17 = scmp.ge.s32.totalorder %s16, 17
      %s23 = sphi 0, %s35
      %s24 = sphi 0, %s31
      %s25 = sphi 0, %s23
      %s26 = sphi 0, %s24
      %s27 = sphi 0, %s25
      %s28 = sphi 0, %s26
      %s38 = sphi 0, %s40
      %s41 = sphi 0, %s38
      %s42 = sphi 0, %s41
      %s58 = sphi 0, %s42
      %s68 = sphi 0, %s70
      %s71 = sphi 0, %s68
      %s72 = sphi 0, %s71
      %s88 = sphi 0, %s72
      %s98 = sphi 0, %s100
      %s101 = sphi 0, %s98
      %s102 = sphi 0, %s101
      %s118 = sphi 0, %s102
      %s126 = sphi 0, %s128
      %s129 = sphi 0, %s126
      %s130 = sphi 0, %s129
      %s146 = sphi 0, %s130
    $region4: #{head_forward.1} parent=1 // loop_header_branch
      %19 = sbr.rel (%p17) target = $region8
    $region5: #{head_forward.1} parent=1 // loop_body
      %s21 = ssub.s32 %s16, 1
      %s22 = ssub.s32 %s16, 2
      %s29 = sadd.s32 1, %s24
      %p30 = scmp.ge.s32.totalorder %s29, 5
      %s31 = scalar_select %p30, 0, %s29
      %s32 = sadd.s32 1, %s23
      %s33 = scalar_select %p30, %s32, %s23
      %p34 = scmp.ge.s32.totalorder %s33, 3
      %s35 = scalar_select %p34, 0, %s33
      %s36 = ssub.s32 %s23, %s35
      %p37 = scmp.eq.s32.totalorder %s36, 0
      %s39 = sadd.s32 %s38, 1
      %s40 = scalar_select %p37, %s38, %s39
      %p43 = pneg %p37
      %p44 = scmp.eq.s32.totalorder %s16, 14
      %p45 = por %p43, %p44
      %p46 = scmp.ne.s32.totalorder %s38, %s41
      %p47 = scmp.eq.s32.totalorder %s16, 0
      %p48 = por %p46, %p47
      %p49 = scmp.ne.s32.totalorder %s38, %s41
      %p50 = scmp.eq.s32.totalorder %s21, 14
      %p51 = por %p49, %p50
      %p52 = scmp.ne.s32.totalorder %s41, %s42
      %p53 = scmp.eq.s32.totalorder %s21, 0
      %p54 = por %p52, %p53
      %p55 = scmp.ne.s32.totalorder %s41, %s42
      %p56 = scmp.eq.s32.totalorder %s22, 14
      %p57 = por %p55, %p56
      %p59 = scmp.ne.s32.totalorder %s42, %s58
      %p60 = scmp.eq.s32.totalorder %s22, 0
      %p61 = por %p59, %p60
      %s62 = sld [smem:[#allocation3 + %s23]]
      %s63 = sld [smem:[#allocation3 + %s35]]
      %s64 = ssub.s32 %s62, %s63
      %s65 = ssub.s32 %s24, %s31
      %s66 = sor.u32 %s64, %s65
      %p67 = scmp.eq.s32.totalorder %s66, 0
      %s69 = sadd.s32 %s68, 1
      %s70 = scalar_select %p67, %s68, %s69
      %p73 = pneg %p67
      %p74 = scmp.eq.s32.totalorder %s16, 14
      %p75 = por %p73, %p74
      %p76 = scmp.ne.s32.totalorder %s68, %s71
      %p77 = scmp.eq.s32.totalorder %s16, 0
      %p78 = por %p76, %p77
      %p79 = scmp.ne.s32.totalorder %s68, %s71
      %p80 = scmp.eq.s32.totalorder %s21, 14
      %p81 = por %p79, %p80
      %p82 = scmp.ne.s32.totalorder %s71, %s72
      %p83 = scmp.eq.s32.totalorder %s21, 0
      %p84 = por %p82, %p83
      %p85 = scmp.ne.s32.totalorder %s71, %s72
      %p86 = scmp.eq.s32.totalorder %s22, 14
      %p87 = por %p85, %p86
      %p89 = scmp.ne.s32.totalorder %s72, %s88
      %p90 = scmp.eq.s32.totalorder %s22, 0
      %p91 = por %p89, %p90
      %s92 = sld [smem:[#allocation3 + %s23]]
      %s93 = sld [smem:[#allocation3 + %s35]]
      %s94 = ssub.s32 %s92, %s93
      %s95 = ssub.s32 %s24, %s31
      %s96 = sor.u32 %s94, %s95
      %p97 = scmp.eq.s32.totalorder %s96, 0
      %s99 = sadd.s32 %s98, 1
      %s100 = scalar_select %p97, %s98, %s99
      %p103 = pneg %p97
      %p104 = scmp.eq.s32.totalorder %s16, 14
      %p105 = por %p103, %p104
      %p106 = scmp.ne.s32.totalorder %s98, %s101
      %p107 = scmp.eq.s32.totalorder %s16, 0
      %p108 = por %p106, %p107
      %p109 = scmp.ne.s32.totalorder %s98, %s101
      %p110 = scmp.eq.s32.totalorder %s21, 14
      %p111 = por %p109, %p110
      %p112 = scmp.ne.s32.totalorder %s101, %s102
      %p113 = scmp.eq.s32.totalorder %s21, 0
      %p114 = por %p112, %p113
      %p115 = scmp.ne.s32.totalorder %s101, %s102
      %p116 = scmp.eq.s32.totalorder %s22, 14
      %p117 = por %p115, %p116
      %p119 = scmp.ne.s32.totalorder %s102, %s118
      %p120 = scmp.eq.s32.totalorder %s22, 0
      %p121 = por %p119, %p120
      %s122 = ssub.s32 %s23, %s35
      %s123 = ssub.s32 %s24, %s31
      %s124 = sor.u32 %s122, %s123
      %p125 = scmp.eq.s32.totalorder %s124, 0
      %s127 = sadd.s32 %s126, 1
      %s128 = scalar_select %p125, %s126, %s127
      %p131 = pneg %p125
      %p132 = scmp.eq.s32.totalorder %s16, 14
      %p133 = por %p131, %p132
      %p134 = scmp.ne.s32.totalorder %s126, %s129
      %p135 = scmp.eq.s32.totalorder %s16, 0
      %p136 = por %p134, %p135
      %p137 = scmp.ne.s32.totalorder %s126, %s129
      %p138 = scmp.eq.s32.totalorder %s21, 14
      %p139 = por %p137, %p138
      %p140 = scmp.ne.s32.totalorder %s129, %s130
      %p141 = scmp.eq.s32.totalorder %s21, 0
      %p142 = por %p140, %p141
      %p143 = scmp.ne.s32.totalorder %s129, %s130
      %p144 = scmp.eq.s32.totalorder %s22, 14
      %p145 = por %p143, %p144
      %p147 = scmp.ne.s32.totalorder %s130, %s146
      %p148 = scmp.eq.s32.totalorder %s22, 0
      %p149 = por %p147, %p148
      %p150 = scmp.le.s32.totalorder 1, %s16
      %p151 = scmp.lt.s32.totalorder %s16, 16
      %p152 = pnand %p150, %p151
      %p153 = pneg %p152
      // Predicated region
      $region9: #{head_forward.1} parent=5 // pred_check
        _
      $region10: #{head_forward.1} parent=5 // pred_check_branch
        %155 = sbr.rel (%p152) target = $region12
      $region11: #{head_forward.1} parent=5 // pred_region
        %s156 = ssub.s32 %s16, 1
      $region12: #{head_forward.1} parent=5 // pred_fallthru
        _
      %p157 = scmp.lt.s32.totalorder %s16, 15
      // Predicated region
      $region13: #{head_forward.1} parent=5 // pred_check
        %p158 = pneg %p157
      $region14: #{head_forward.1} parent=5 // pred_check_branch
        %160 = sbr.rel (%p158) target = $region16
      $region15: #{head_forward.1} parent=5 // pred_region
        // Predicated region
        $region17: #{head_forward.1} parent=15 // pred_check
          %p161 = pneg %p48
        $region18: #{head_forward.1} parent=15 // pred_check_branch
          %163 = sbr.rel (%p161) target = $region20
        $region19: #{head_forward.1} parent=15 // pred_region
          %s164 = smul.u32 16, %s23
          %p165 = scmp.lt.s32.totalorder %s164, 47
          %s166 = scalar_select %p165, %s164, 47
          %s167 = smul.addr %s166, 3
          %s168 = smul.addr %s167, 4
          %s169 = scalar_lea.vmem %s1, %s168
          %s170 = smul.u32 16, %s23
        $region20: #{head_forward.1} parent=15 // pred_fallthru
          _
        // Predicated region
        $region21: #{head_forward.1} parent=15 // pred_check
          %p171 = pneg %p78
        $region22: #{head_forward.1} parent=15 // pred_check_branch
          %173 = sbr.rel (%p171) target = $region24
        $region23: #{head_forward.1} parent=15 // pred_region
          %s174 = sand.u32 %s68, 1
          %s175 = sand.u32 %s68, 1
          %s176 = smul.addr %s175, 144
          %s177 = scalar_lea.vmem [#allocation4], %s176
          %s178 = sld [smem:[#allocation3 + %s23]]
          %s179 = smul.addr %s178, 180
          %s180 = sadd.s32 %s24, %s179
          %s181 = smul.addr %s180, 4
          %s182 = scalar_lea.vmem %s2, %s181
          // Predicated region
          $region25: #{head_forward.1} parent=23 // pred_check
            _
          $region26: #{head_forward.1} parent=23 // pred_check_branch
            %184 = sbr.rel (0) target = $region28
          $region27: #{head_forward.1} parent=23 // pred_region
            // Predicated region
            $region29: #{head_forward.1} parent=27 // pred_check
              _
            $region30: #{head_forward.1} parent=27 // pred_check_branch
              %186 = sbr.rel target = $region32
            $region31: #{head_forward.1} parent=27 // pred_region
              // Predicated region
              $region44: #{head_forward.1} parent=31 // pred_check
                _
              $region45: #{head_forward.1} parent=31 // pred_check_branch
                %272 = sbr.rel (0) target = $region47
              $region46: #{head_forward.1} parent=31 // pred_region
                loop: start=0, step=1, limit=1
                $region48: #{head_forward.1} parent=46 // loop_pre_header
                  _
                $region49: #{head_forward.1} parent=46 // loop_header
                  %s274 = sphi 0, %s278
                  %p275 = scmp.ge.s32.totalorder %s274, 1
                  %s279 = sphi %s182, %s182
                  %s280 = sphi %s177, %s177
                $region50: #{head_forward.1} parent=46 // loop_header_branch
                  %277 = sbr.rel (%p275) target = $region54
                $region51: #{head_forward.1} parent=46 // loop_body
                  _
                $region52: #{head_forward.1} parent=46 // loop_footer
                  %s278 = sadd.s32 1, %s274
                $region53: #{head_forward.1} parent=46 // loop_footer_branch
                  %273 = sbr.rel target = $region49
                $region54: #{head_forward.1} parent=46 // loop_exit
                  _
                %s282 = ssub.s32 16, 1
                loop: start=0, step=1, limit=1
                $region55: #{head_forward.1} parent=46 // loop_pre_header
                  _
                $region56: #{head_forward.1} parent=46 // loop_header
                  %s284 = sphi 0, %s288
                  %p285 = scmp.ge.s32.totalorder %s284, 1
                  %s289 = sphi %s182, %s182
                  %s290 = sphi %s177, %s177
                $region57: #{head_forward.1} parent=46 // loop_header_branch
                  %287 = sbr.rel (%p285) target = $region61
                $region58: #{head_forward.1} parent=46 // loop_body
                  %v291 = vld [vmem:[%s289] sm:%s282]
                  %292 = vst [vmem:[%s290] sm:%s282] %v291
                  %v293 = vld [vmem:[%s289 + $0x14] sm:%s282]
                  %294 = vst [vmem:[%s290 + $0x4] sm:%s282] %v293
                  %v295 = vld [vmem:[%s289 + $0x28] sm:%s282]
                  %296 = vst [vmem:[%s290 + $0x8] sm:%s282] %v295
                  %v297 = vld [vmem:[%s289 + $0x3c] sm:%s282]
                  %298 = vst [vmem:[%s290 + $0xc] sm:%s282] %v297
                  %v299 = vld [vmem:[%s289 + $0x50] sm:%s282]
                  %300 = vst [vmem:[%s290 + $0x10] sm:%s282] %v299
                  %v301 = vld [vmem:[%s289 + $0x64] sm:%s282]
                  %302 = vst [vmem:[%s290 + $0x14] sm:%s282] %v301
                  %v303 = vld [vmem:[%s289 + $0x78] sm:%s282]
                  %304 = vst [vmem:[%s290 + $0x18] sm:%s282] %v303
                  %v305 = vld [vmem:[%s289 + $0x8c] sm:%s282]
                  %306 = vst [vmem:[%s290 + $0x1c] sm:%s282] %v305
                  %v307 = vld [vmem:[%s289 + $0xa0] sm:%s282]
                  %308 = vst [vmem:[%s290 + $0x20] sm:%s282] %v307
                  %v309 = vld [vmem:[%s289 + $0xb4] sm:%s282]
                  %310 = vst [vmem:[%s290 + $0x24] sm:%s282] %v309
                  %v311 = vld [vmem:[%s289 + $0xc8] sm:%s282]
                  %312 = vst [vmem:[%s290 + $0x28] sm:%s282] %v311
                  %v313 = vld [vmem:[%s289 + $0xdc] sm:%s282]
                  %314 = vst [vmem:[%s290 + $0x2c] sm:%s282] %v313
                  %v315 = vld [vmem:[%s289 + $0xf0] sm:%s282]
                  %316 = vst [vmem:[%s290 + $0x30] sm:%s282] %v315
                  %v317 = vld [vmem:[%s289 + $0x104] sm:%s282]
                  %318 = vst [vmem:[%s290 + $0x34] sm:%s282] %v317
                  %v319 = vld [vmem:[%s289 + $0x118] sm:%s282]
                  %320 = vst [vmem:[%s290 + $0x38] sm:%s282] %v319
                  %v321 = vld [vmem:[%s289 + $0x12c] sm:%s282]
                  %322 = vst [vmem:[%s290 + $0x3c] sm:%s282] %v321
                  %v323 = vld [vmem:[%s289 + $0x140] sm:%s282]
                  %324 = vst [vmem:[%s290 + $0x40] sm:%s282] %v323
                  %v325 = vld [vmem:[%s289 + $0x154] sm:%s282]
                  %326 = vst [vmem:[%s290 + $0x44] sm:%s282] %v325
                  %v327 = vld [vmem:[%s289 + $0x168] sm:%s282]
                  %328 = vst [vmem:[%s290 + $0x48] sm:%s282] %v327
                  %v329 = vld [vmem:[%s289 + $0x17c] sm:%s282]
                  %330 = vst [vmem:[%s290 + $0x4c] sm:%s282] %v329
                  %v331 = vld [vmem:[%s289 + $0x190] sm:%s282]
                  %332 = vst [vmem:[%s290 + $0x50] sm:%s282] %v331
                  %v333 = vld [vmem:[%s289 + $0x1a4] sm:%s282]
                  %334 = vst [vmem:[%s290 + $0x54] sm:%s282] %v333
                  %v335 = vld [vmem:[%s289 + $0x1b8] sm:%s282]
                  %336 = vst [vmem:[%s290 + $0x58] sm:%s282] %v335
                  %v337 = vld [vmem:[%s289 + $0x1cc] sm:%s282]
                  %338 = vst [vmem:[%s290 + $0x5c] sm:%s282] %v337
                  %v339 = vld [vmem:[%s289 + $0x1e0] sm:%s282]
                  %340 = vst [vmem:[%s290 + $0x60] sm:%s282] %v339
                  %v341 = vld [vmem:[%s289 + $0x1f4] sm:%s282]
                  %342 = vst [vmem:[%s290 + $0x64] sm:%s282] %v341
                  %v343 = vld [vmem:[%s289 + $0x208] sm:%s282]
                  %344 = vst [vmem:[%s290 + $0x68] sm:%s282] %v343
                  %v345 = vld [vmem:[%s289 + $0x21c] sm:%s282]
                  %346 = vst [vmem:[%s290 + $0x6c] sm:%s282] %v345
                  %v347 = vld [vmem:[%s289 + $0x230] sm:%s282]
                  %348 = vst [vmem:[%s290 + $0x70] sm:%s282] %v347
                  %v349 = vld [vmem:[%s289 + $0x244] sm:%s282]
                  %350 = vst [vmem:[%s290 + $0x74] sm:%s282] %v349
                  %v351 = vld [vmem:[%s289 + $0x258] sm:%s282]
                  %352 = vst [vmem:[%s290 + $0x78] sm:%s282] %v351
                  %v353 = vld [vmem:[%s289 + $0x26c] sm:%s282]
                  %354 = vst [vmem:[%s290 + $0x7c] sm:%s282] %v353
                  %v355 = vld [vmem:[%s289 + $0x280] sm:%s282]
                  %356 = vst [vmem:[%s290 + $0x80] sm:%s282] %v355
                  %v357 = vld [vmem:[%s289 + $0x294] sm:%s282]
                  %358 = vst [vmem:[%s290 + $0x84] sm:%s282] %v357
                  %v359 = vld [vmem:[%s289 + $0x2a8] sm:%s282]
                  %360 = vst [vmem:[%s290 + $0x88] sm:%s282] %v359
                  %v361 = vld [vmem:[%s289 + $0x2bc] sm:%s282]
                  %362 = vst [vmem:[%s290 + $0x8c] sm:%s282] %v361
                $region59: #{head_forward.1} parent=46 // loop_footer
                  %s288 = sadd.s32 1, %s284
                $region60: #{head_forward.1} parent=46 // loop_footer_branch
                  %283 = sbr.rel target = $region56
                $region61: #{head_forward.1} parent=46 // loop_exit
                  _
              $region47: #{head_forward.1} parent=31 // pred_fallthru
                _
            $region32: #{head_forward.1} parent=27 // pred_fallthru
              _
            // Predicated region
            $region33: #{head_forward.1} parent=27 // pred_check
              _
            $region34: #{head_forward.1} parent=27 // pred_check_branch
              %188 = sbr.rel (0) target = $region36
            $region35: #{head_forward.1} parent=27 // pred_region
              %s190 = ssub.s32 16, 1
              loop: start=0, step=1, limit=1
              $region37: #{head_forward.1} parent=35 // loop_pre_header
                _
              $region38: #{head_forward.1} parent=35 // loop_header
                %s192 = sphi 0, %s196
                %p193 = scmp.ge.s32.totalorder %s192, 1
                %s197 = sphi %s182, %s182
                %s198 = sphi %s177, %s177
              $region39: #{head_forward.1} parent=35 // loop_header_branch
                %195 = sbr.rel (%p193) target = $region43
              $region40: #{head_forward.1} parent=35 // loop_body
                %v199 = vld [vmem:[%s197] sm:%s190]
                %200 = vst [vmem:[%s198] sm:%s190] %v199
                %v201 = vld [vmem:[%s197 + $0x14] sm:%s190]
                %202 = vst [vmem:[%s198 + $0x4] sm:%s190] %v201
                %v203 = vld [vmem:[%s197 + $0x28] sm:%s190]
                %204 = vst [vmem:[%s198 + $0x8] sm:%s190] %v203
                %v205 = vld [vmem:[%s197 + $0x3c] sm:%s190]
                %206 = vst [vmem:[%s198 + $0xc] sm:%s190] %v205
                %v207 = vld [vmem:[%s197 + $0x50] sm:%s190]
                %208 = vst [vmem:[%s198 + $0x10] sm:%s190] %v207
                %v209 = vld [vmem:[%s197 + $0x64] sm:%s190]
                %210 = vst [vmem:[%s198 + $0x14] sm:%s190] %v209
                %v211 = vld [vmem:[%s197 + $0x78] sm:%s190]
                %212 = vst [vmem:[%s198 + $0x18] sm:%s190] %v211
                %v213 = vld [vmem:[%s197 + $0x8c] sm:%s190]
                %214 = vst [vmem:[%s198 + $0x1c] sm:%s190] %v213
                %v215 = vld [vmem:[%s197 + $0xa0] sm:%s190]
                %216 = vst [vmem:[%s198 + $0x20] sm:%s190] %v215
                %v217 = vld [vmem:[%s197 + $0xb4] sm:%s190]
                %218 = vst [vmem:[%s198 + $0x24] sm:%s190] %v217
                %v219 = vld [vmem:[%s197 + $0xc8] sm:%s190]
                %220 = vst [vmem:[%s198 + $0x28] sm:%s190] %v219
                %v221 = vld [vmem:[%s197 + $0xdc] sm:%s190]
                %222 = vst [vmem:[%s198 + $0x2c] sm:%s190] %v221
                %v223 = vld [vmem:[%s197 + $0xf0] sm:%s190]
                %224 = vst [vmem:[%s198 + $0x30] sm:%s190] %v223
                %v225 = vld [vmem:[%s197 + $0x104] sm:%s190]
                %226 = vst [vmem:[%s198 + $0x34] sm:%s190] %v225
                %v227 = vld [vmem:[%s197 + $0x118] sm:%s190]
                %228 = vst [vmem:[%s198 + $0x38] sm:%s190] %v227
                %v229 = vld [vmem:[%s197 + $0x12c] sm:%s190]
                %230 = vst [vmem:[%s198 + $0x3c] sm:%s190] %v229
                %v231 = vld [vmem:[%s197 + $0x140] sm:%s190]
                %232 = vst [vmem:[%s198 + $0x40] sm:%s190] %v231
                %v233 = vld [vmem:[%s197 + $0x154] sm:%s190]
                %234 = vst [vmem:[%s198 + $0x44] sm:%s190] %v233
                %v235 = vld [vmem:[%s197 + $0x168] sm:%s190]
                %236 = vst [vmem:[%s198 + $0x48] sm:%s190] %v235
                %v237 = vld [vmem:[%s197 + $0x17c] sm:%s190]
                %238 = vst [vmem:[%s198 + $0x4c] sm:%s190] %v237
                %v239 = vld [vmem:[%s197 + $0x190] sm:%s190]
                %240 = vst [vmem:[%s198 + $0x50] sm:%s190] %v239
                %v241 = vld [vmem:[%s197 + $0x1a4] sm:%s190]
                %242 = vst [vmem:[%s198 + $0x54] sm:%s190] %v241
                %v243 = vld [vmem:[%s197 + $0x1b8] sm:%s190]
                %244 = vst [vmem:[%s198 + $0x58] sm:%s190] %v243
                %v245 = vld [vmem:[%s197 + $0x1cc] sm:%s190]
                %246 = vst [vmem:[%s198 + $0x5c] sm:%s190] %v245
                %v247 = vld [vmem:[%s197 + $0x1e0] sm:%s190]
                %248 = vst [vmem:[%s198 + $0x60] sm:%s190] %v247
                %v249 = vld [vmem:[%s197 + $0x1f4] sm:%s190]
                %250 = vst [vmem:[%s198 + $0x64] sm:%s190] %v249
                %v251 = vld [vmem:[%s197 + $0x208] sm:%s190]
                %252 = vst [vmem:[%s198 + $0x68] sm:%s190] %v251
                %v253 = vld [vmem:[%s197 + $0x21c] sm:%s190]
                %254 = vst [vmem:[%s198 + $0x6c] sm:%s190] %v253
                %v255 = vld [vmem:[%s197 + $0x230] sm:%s190]
                %256 = vst [vmem:[%s198 + $0x70] sm:%s190] %v255
                %v257 = vld [vmem:[%s197 + $0x244] sm:%s190]
                %258 = vst [vmem:[%s198 + $0x74] sm:%s190] %v257
                %v259 = vld [vmem:[%s197 + $0x258] sm:%s190]
                %260 = vst [vmem:[%s198 + $0x78] sm:%s190] %v259
                %v261 = vld [vmem:[%s197 + $0x26c] sm:%s190]
                %262 = vst [vmem:[%s198 + $0x7c] sm:%s190] %v261
                %v263 = vld [vmem:[%s197 + $0x280] sm:%s190]
                %264 = vst [vmem:[%s198 + $0x80] sm:%s190] %v263
                %v265 = vld [vmem:[%s197 + $0x294] sm:%s190]
                %266 = vst [vmem:[%s198 + $0x84] sm:%s190] %v265
                %v267 = vld [vmem:[%s197 + $0x2a8] sm:%s190]
                %268 = vst [vmem:[%s198 + $0x88] sm:%s190] %v267
                %v269 = vld [vmem:[%s197 + $0x2bc] sm:%s190]
                %270 = vst [vmem:[%s198 + $0x8c] sm:%s190] %v269
              $region41: #{head_forward.1} parent=35 // loop_footer
                %s196 = sadd.s32 1, %s192
              $region42: #{head_forward.1} parent=35 // loop_footer_branch
                %191 = sbr.rel target = $region38
              $region43: #{head_forward.1} parent=35 // loop_exit
                _
            $region36: #{head_forward.1} parent=27 // pred_fallthru
              _
          $region28: #{head_forward.1} parent=23 // pred_fallthru
            _
          %363 = vnop
        $region24: #{head_forward.1} parent=15 // pred_fallthru
          _
        // Predicated region
        $region62: #{head_forward.1} parent=15 // pred_check
          %p364 = pneg %p108
        $region63: #{head_forward.1} parent=15 // pred_check_branch
          %366 = sbr.rel (%p364) target = $region65
        $region64: #{head_forward.1} parent=15 // pred_region
          %s367 = sld [smem:[#allocation3 + %s23]]
          %p368 = scmp.lt.s32.totalorder %s367, 2
          %s369 = scalar_select %p368, %s367, 2
          %p370 = scmp.lt.s32.totalorder %s24, 4
          %s371 = scalar_select %p370, %s24, 4
          %s372 = smul.addr %s369, 5
          %s373 = sadd.s32 %s371, %s372
          %s374 = scalar_lea.vmem %s3, %s373
          %s375 = sld [smem:[#allocation3 + %s23]]
        $region65: #{head_forward.1} parent=15 // pred_fallthru
          _
      $region16: #{head_forward.1} parent=5 // pred_fallthru
        _
      %p376 = scmp.le.s32.totalorder 1, %s16
      %p377 = scmp.lt.s32.totalorder %s16, 16
      %p378 = pnand %p376, %p377
      %p379 = pneg %p378
      // Predicated region
      $region66: #{head_forward.1} parent=5 // pred_check
        _
      $region67: #{head_forward.1} parent=5 // pred_check_branch
        %381 = sbr.rel (%p378) target = $region69
      $region68: #{head_forward.1} parent=5 // pred_region
        %s382 = ssub.s32 %s16, 1
        %s383 = sand.u32 %s71, 1
        %s384 = sand.u32 %s71, 1
        %s385 = smul.addr %s384, 144
        %s386 = scalar_lea.vmem [#allocation4], %s385
        // Predicated region
        $region70: #{head_forward.1} parent=68 // pred_check
          %p387 = pneg %p84
        $region71: #{head_forward.1} parent=68 // pred_check_branch
          %389 = sbr.rel (%p387) target = $region73
        $region72: #{head_forward.1} parent=68 // pred_region
          _
        $region73: #{head_forward.1} parent=68 // pred_fallthru
          _
        %s390 = smul.u32 16, %s25
        %p391 = scmp.lt.s32.totalorder %s390, 47
        %s392 = scalar_select %p391, %s390, 47
        %s393 = smul.addr %s392, 3
        %s394 = smul.addr %s393, 4
        %s395 = scalar_lea.vmem %s1, %s394
        %p396 = pneg %p54
        %p397 = pneg %p51
        %s398 = sand.u32 %s71, 1
        %s399 = sand.u32 %s71, 1
        %s400 = smul.addr %s399, 144
        %s401 = scalar_lea.vmem [#allocation4], %s400
        %p402 = pneg %p84
        %p403 = pneg %p81
        %s404 = sld [smem:[#allocation3 + %s25]]
        %p405 = scmp.lt.s32.totalorder %s404, 2
        %s406 = scalar_select %p405, %s404, 2
        %p407 = scmp.lt.s32.totalorder %s26, 4
        %s408 = scalar_select %p407, %s26, 4
        %s409 = smul.addr %s406, 5
        %s410 = sadd.s32 %s408, %s409
        %s411 = scalar_lea.vmem %s3, %s410
        %p412 = pneg %p114
        %p413 = pneg %p111
        %p414 = pneg %p142
        %p415 = pneg %p139
        %s416 = sand.u32 %s129, 1
        %s417 = sand.u32 %s129, 1
        %s418 = smul.addr %s417, 128
        %s419 = scalar_lea.vmem [#allocation5], %s418
        %s420 = smul.u32 16, %s25
        %p421 = scmp.lt.s32.totalorder %s420, 47
        %s422 = scalar_select %p421, %s420, 47
        %s423 = smul.addr %s422, 3
        %s424 = smul.addr %s423, 4
        %s425 = scalar_lea.vmem %s1, %s424
        %s426 = smul.u32 16, %s25
        %s427 = sld [smem:[#allocation3 + %s25]]
        %s428 = sld [smem:[#allocation3 + %s25]]
        %p429 = scmp.lt.s32.totalorder %s428, 2
        %s430 = scalar_select %p429, %s428, 2
        %p431 = scmp.lt.s32.totalorder %s26, 4
        %s432 = scalar_select %p431, %s26, 4
        %s433 = smul.addr %s430, 5
        %s434 = sadd.s32 %s432, %s433
        %s435 = scalar_lea.vmem %s3, %s434
        %s436 = sld [smem:[#allocation3 + %s25]]
        %s437 = smul.u32 16, %s25
        %v439 = vld [vmem:[%s425] sm:$0xff]
        %v440 = vld [vmem:[%s425 + $0x8] sm:$0xf]
        %v441 = vld [vmem:[%s425 + $0xc] sm:$0xff]
        %v442 = vld [vmem:[%s425 + $0x14] sm:$0xf]
        %v443 = vld [vmem:[%s425 + $0x18] sm:$0xff]
        %v444 = vld [vmem:[%s425 + $0x20] sm:$0xf]
        %v445 = vld [vmem:[%s425 + $0x24] sm:$0xff]
        %v446 = vld [vmem:[%s425 + $0x2c] sm:$0xf]
        %v447 = vld [vmem:[%s425 + $0x30] sm:$0xff]
        %v448 = vld [vmem:[%s425 + $0x38] sm:$0xf]
        %v449 = vld [vmem:[%s425 + $0x3c] sm:$0xff]
        %v450 = vld [vmem:[%s425 + $0x44] sm:$0xf]
        %v451 = vld [vmem:[%s425 + $0x48] sm:$0xff]
        %v452 = vld [vmem:[%s425 + $0x50] sm:$0xf]
        %v453 = vld [vmem:[%s425 + $0x54] sm:$0xff]
        %v454 = vld [vmem:[%s425 + $0x5c] sm:$0xf]
        %v455 = vld [vmem:[%s425 + $0x60] sm:$0xff]
        %v456 = vld [vmem:[%s425 + $0x68] sm:$0xf]
        %v457 = vld [vmem:[%s425 + $0x6c] sm:$0xff]
        %v458 = vld [vmem:[%s425 + $0x74] sm:$0xf]
        %v459 = vld [vmem:[%s425 + $0x78] sm:$0xff]
        %v460 = vld [vmem:[%s425 + $0x80] sm:$0xf]
        %v461 = vld [vmem:[%s425 + $0x84] sm:$0xff]
        %v462 = vld [vmem:[%s425 + $0x8c] sm:$0xf]
        %v463 = vld [vmem:[%s425 + $0x90] sm:$0xff]
        %v464 = vld [vmem:[%s425 + $0x98] sm:$0xf]
        %v465 = vld [vmem:[%s425 + $0x9c] sm:$0xff]
        %v466 = vld [vmem:[%s425 + $0xa4] sm:$0xf]
        %v467 = vld [vmem:[%s425 + $0xa8] sm:$0xff]
        %v468 = vld [vmem:[%s425 + $0xb0] sm:$0xf]
        %v469 = vld [vmem:[%s425 + $0xb4] sm:$0xff]
        %v470 = vld [vmem:[%s425 + $0xbc] sm:$0xf]
        %v471 = vld [vmem:[%s386] sm:$0xf]
        %v472 = vld [vmem:[%s386 + $0x4] sm:$0xf]
        %v473 = vld [vmem:[%s386 + $0x8] sm:$0xf]
        %v474 = vld [vmem:[%s386 + $0xc] sm:$0xf]
        %v475 = vld [vmem:[%s386 + $0x10] sm:$0xf]
        %v476 = vld [vmem:[%s386 + $0x14] sm:$0xf]
        %v477 = vld [vmem:[%s386 + $0x18] sm:$0xf]
        %v478 = vld [vmem:[%s386 + $0x1c] sm:$0xf]
        %v479 = vld [vmem:[%s386 + $0x20] sm:$0xf]
        %v480 = vld [vmem:[%s386 + $0x24] sm:$0xf]
        %v481 = vld [vmem:[%s386 + $0x28] sm:$0xf]
        %v482 = vld [vmem:[%s386 + $0x2c] sm:$0xf]
        %v483 = vld [vmem:[%s386 + $0x30] sm:$0xf]
        %v484 = vld [vmem:[%s386 + $0x34] sm:$0xf]
        %v485 = vld [vmem:[%s386 + $0x38] sm:$0xf]
        %v486 = vld [vmem:[%s386 + $0x3c] sm:$0xf]
        %v487 = vld [vmem:[%s386 + $0x40] sm:$0xf]
        %v488 = vld [vmem:[%s386 + $0x44] sm:$0xf]
        %v489 = vld [vmem:[%s386 + $0x48] sm:$0xf]
        %v490 = vld [vmem:[%s386 + $0x4c] sm:$0xf]
        %v491 = vld [vmem:[%s386 + $0x50] sm:$0xf]
        %v492 = vld [vmem:[%s386 + $0x54] sm:$0xf]
        %v493 = vld [vmem:[%s386 + $0x58] sm:$0xf]
        %v494 = vld [vmem:[%s386 + $0x5c] sm:$0xf]
        %v495 = vld [vmem:[%s386 + $0x60] sm:$0xf]
        %v496 = vld [vmem:[%s386 + $0x64] sm:$0xf]
        %v497 = vld [vmem:[%s386 + $0x68] sm:$0xf]
        %v498 = vld [vmem:[%s386 + $0x6c] sm:$0xf]
        %v499 = vld [vmem:[%s386 + $0x70] sm:$0xf]
        %v500 = vld [vmem:[%s386 + $0x74] sm:$0xf]
        %v501 = vld [vmem:[%s386 + $0x78] sm:$0xf]
        %v502 = vld [vmem:[%s386 + $0x7c] sm:$0xf]
        %v503 = vld [vmem:[%s386 + $0x80] sm:$0xf]
        %v504 = vld [vmem:[%s386 + $0x84] sm:$0xf]
        %v505 = vld [vmem:[%s386 + $0x88] sm:$0xf]
        %v506 = vld [vmem:[%s386 + $0x8c] sm:$0xf]
        %v507 = vld [vmem:[%s435] sm:$0x1]
        %v509 = vlaneseq
        %v510 = vshrl.u32 %v509, 7
        %v511 = vsub.s32 0, %v510
        %v512 = vrot.slane %v507, %v511
        %v546 = vunpack.c.l.b16 %v439
        %v547 = vunpack.c.h.b16 %v439
        %v548 = vunpack.c.l.b16 %v440
        %v549 = vunpack.c.l.b16 %v441
        %v550 = vunpack.c.h.b16 %v441
        %v551 = vunpack.c.l.b16 %v442
        %v552 = vunpack.c.l.b16 %v443
        %v553 = vunpack.c.h.b16 %v443
        %v554 = vunpack.c.l.b16 %v444
        %v555 = vunpack.c.l.b16 %v445
        %v556 = vunpack.c.h.b16 %v445
        %v557 = vunpack.c.l.b16 %v446
        %v558 = vunpack.c.l.b16 %v447
        %v559 = vunpack.c.h.b16 %v447
        %v560 = vunpack.c.l.b16 %v448
        %v561 = vunpack.c.l.b16 %v449
        %v562 = vunpack.c.h.b16 %v449
        %v563 = vunpack.c.l.b16 %v450
        %v564 = vunpack.c.l.b16 %v451
        %v565 = vunpack.c.h.b16 %v451
        %v566 = vunpack.c.l.b16 %v452
        %v567 = vunpack.c.l.b16 %v453
        %v568 = vunpack.c.h.b16 %v453
        %v569 = vunpack.c.l.b16 %v454
        %v570 = vunpack.c.l.b16 %v455
        %v571 = vunpack.c.h.b16 %v455
        %v572 = vunpack.c.l.b16 %v456
        %v573 = vunpack.c.l.b16 %v457
        %v574 = vunpack.c.h.b16 %v457
        %v575 = vunpack.c.l.b16 %v458
        %v576 = vunpack.c.l.b16 %v459
        %v577 = vunpack.c.h.b16 %v459
        %v578 = vunpack.c.l.b16 %v460
        %v579 = vunpack.c.l.b16 %v461
        %v580 = vunpack.c.h.b16 %v461
        %v581 = vunpack.c.l.b16 %v462
        %v582 = vunpack.c.l.b16 %v463
        %v583 = vunpack.c.h.b16 %v463
        %v584 = vunpack.c.l.b16 %v464
        %v585 = vunpack.c.l.b16 %v465
        %v586 = vunpack.c.h.b16 %v465
        %v587 = vunpack.c.l.b16 %v466
        %v588 = vunpack.c.l.b16 %v467
        %v589 = vunpack.c.h.b16 %v467
        %v590 = vunpack.c.l.b16 %v468
        %v591 = vunpack.c.l.b16 %v469
        %v592 = vunpack.c.h.b16 %v469
        %v593 = vunpack.c.l.b16 %v470
        %v594 = vpack.c.b16 %v549, %v546
        %v595 = vpack.c.b16 %v550, %v547
        %v596 = vpack.c.b16 %v551, %v548
        %v597 = vpack.c.b16 %v555, %v552
        %v598 = vpack.c.b16 %v556, %v553
        %v599 = vpack.c.b16 %v557, %v554
        %v600 = vpack.c.b16 %v561, %v558
        %v601 = vpack.c.b16 %v562, %v559
        %v602 = vpack.c.b16 %v563, %v560
        %v603 = vpack.c.b16 %v567, %v564
        %v604 = vpack.c.b16 %v568, %v565
        %v605 = vpack.c.b16 %v569, %v566
        %v606 = vpack.c.b16 %v573, %v570
        %v607 = vpack.c.b16 %v574, %v571
        %v608 = vpack.c.b16 %v575, %v572
        %v609 = vpack.c.b16 %v579, %v576
        %v610 = vpack.c.b16 %v580, %v577
        %v611 = vpack.c.b16 %v581, %v578
        %v612 = vpack.c.b16 %v585, %v582
        %v613 = vpack.c.b16 %v586, %v583
        %v614 = vpack.c.b16 %v587, %v584
        %v615 = vpack.c.b16 %v591, %v588
        %v616 = vpack.c.b16 %v592, %v589
        %v617 = vpack.c.b16 %v593, %v590
        %v670 = vunpack.c.l.b16 %v471
        %v671 = vunpack.c.l.b16 %v472
        %v672 = vunpack.c.l.b16 %v473
        %v673 = vunpack.c.l.b16 %v474
        %v674 = vunpack.c.l.b16 %v475
        %v675 = vunpack.c.l.b16 %v476
        %v676 = vunpack.c.l.b16 %v477
        %v677 = vunpack.c.l.b16 %v478
        %v678 = vunpack.c.l.b16 %v479
        %v679 = vunpack.c.l.b16 %v480
        %v680 = vunpack.c.l.b16 %v481
        %v681 = vunpack.c.l.b16 %v482
        %v682 = vunpack.c.l.b16 %v483
        %v683 = vunpack.c.l.b16 %v484
        %v684 = vunpack.c.l.b16 %v485
        %v685 = vunpack.c.l.b16 %v486
        %v686 = vunpack.c.l.b16 %v487
        %v687 = vunpack.c.l.b16 %v488
        %v688 = vunpack.c.l.b16 %v489
        %v689 = vunpack.c.l.b16 %v490
        %v690 = vunpack.c.l.b16 %v491
        %v691 = vunpack.c.l.b16 %v492
        %v692 = vunpack.c.l.b16 %v493
        %v693 = vunpack.c.l.b16 %v494
        %v694 = vunpack.c.l.b16 %v495
        %v695 = vunpack.c.l.b16 %v496
        %v696 = vunpack.c.l.b16 %v497
        %v697 = vunpack.c.l.b16 %v498
        %v698 = vunpack.c.l.b16 %v499
        %v699 = vunpack.c.l.b16 %v500
        %v700 = vunpack.c.l.b16 %v501
        %v701 = vunpack.c.l.b16 %v502
        %v702 = vunpack.c.l.b16 %v503
        %v703 = vunpack.c.l.b16 %v504
        %v704 = vunpack.c.l.b16 %v505
        %v705 = vunpack.c.l.b16 %v506
        %v706 = vpack.c.b16 %v671, %v670
        %v707 = vpack.c.b16 %v673, %v672
        %v708 = vpack.c.b16 %v675, %v674
        %v709 = vpack.c.b16 %v677, %v676
        %v710 = vpack.c.b16 %v679, %v678
        %v711 = vpack.c.b16 %v681, %v680
        %v712 = vpack.c.b16 %v683, %v682
        %v713 = vpack.c.b16 %v685, %v684
        %v714 = vpack.c.b16 %v687, %v686
        %v715 = vpack.c.b16 %v689, %v688
        %v716 = vpack.c.b16 %v691, %v690
        %v717 = vpack.c.b16 %v693, %v692
        %v718 = vpack.c.b16 %v695, %v694
        %v719 = vpack.c.b16 %v697, %v696
        %v720 = vpack.c.b16 %v699, %v698
        %v721 = vpack.c.b16 %v701, %v700
        %v722 = vpack.c.b16 %v703, %v702
        %v723 = vpack.c.b16 %v705, %v704
        %vm742 = vcmask 261120
        %v744 = vsel %vm742, %v596, 0
        %v747 = vsel %vm742, %v599, 0
        %v750 = vsel %vm742, %v602, 0
        %v753 = vsel %vm742, %v605, 0
        %v756 = vsel %vm742, %v608, 0
        %v759 = vsel %vm742, %v611, 0
        %v762 = vsel %vm742, %v614, 0
        %v765 = vsel %vm742, %v617, 0
        %767 = vmatprep.subr.bf16.mxu0 0
        %768 = vmatpush1.bf16.msra.mxu0 %v713
        %769 = vmatprep.subr.bf16.mxu0 0
        %770 = vmatpush1.bf16.msra.mxu0 %v712
        %771 = vmatprep.subr.bf16.mxu0 0
        %772 = vmatpush1.bf16.msra.mxu0 %v711
        %773 = vmatprep.subr.bf16.mxu0 0
        %774 = vmatpush1.bf16.msra.mxu0 %v710
        %775 = vmatprep.subr.bf16.mxu0 0
        %776 = vmatpush1.bf16.msra.mxu0 %v709
        %777 = vmatprep.subr.bf16.mxu0 0
        %778 = vmatpush1.bf16.msra.mxu0 %v708
        %779 = vmatprep.subr.bf16.mxu0 0
        %780 = vmatpush1.bf16.msra.mxu0 %v707
        %781 = vmatprep.subr.bf16.mxu0 0
        %782 = vmatpush1.bf16.msra.mxu0 %v706
        %783 = vmatprep.subr.bf16.mxu0 0
        %784 = vmatpush2.bf16.msra.mxu0 %v721
        %785 = vmatprep.subr.bf16.mxu0 0
        %786 = vmatpush2.bf16.msra.mxu0 %v720
        %787 = vmatprep.subr.bf16.mxu0 0
        %788 = vmatpush2.bf16.msra.mxu0 %v719
        %789 = vmatprep.subr.bf16.mxu0 0
        %790 = vmatpush2.bf16.msra.mxu0 %v718
        %791 = vmatprep.subr.bf16.mxu0 0
        %792 = vmatpush2.bf16.msra.mxu0 %v717
        %793 = vmatprep.subr.bf16.mxu0 0
        %794 = vmatpush2.bf16.msra.mxu0 %v716
        %795 = vmatprep.subr.bf16.mxu0 0
        %796 = vmatpush2.bf16.msra.mxu0 %v715
        %797 = vmatprep.subr.bf16.mxu0 0
        %798 = vmatpush2.bf16.msra.mxu0 %v714
        %799 = vmatprep.mubr.bf16.mxu0 %v595
        %800 = vmatmul.mubr.bf16.gmra.mxu0 %v594
        %v801 = vpop.f32.mrf.mxu0
        %v802 = vadd.f32 %v512, %v801
        %v803 = vpop.f32.mrf.mxu0
        %v804 = vpop.f32.mrf.mxu0
        %v805 = vadd.f32 %v512, %v804
        %v806 = vpop.f32.mrf.mxu0
        %807 = vmatprep.mubr.bf16.mxu0 %v598
        %808 = vmatmul.mubr.bf16.gmra.mxu0 %v597
        %v809 = vpop.f32.mrf.mxu0
        %v810 = vadd.f32 %v512, %v809
        %v811 = vpop.f32.mrf.mxu0
        %v812 = vpop.f32.mrf.mxu0
        %v813 = vadd.f32 %v512, %v812
        %v814 = vpop.f32.mrf.mxu0
        %815 = vmatprep.mubr.bf16.mxu0 %v601
        %816 = vmatmul.mubr.bf16.gmra.mxu0 %v600
        %v817 = vpop.f32.mrf.mxu0
        %v818 = vadd.f32 %v512, %v817
        %v819 = vpop.f32.mrf.mxu0
        %v820 = vpop.f32.mrf.mxu0
        %v821 = vadd.f32 %v512, %v820
        %v822 = vpop.f32.mrf.mxu0
        %823 = vmatprep.mubr.bf16.mxu0 %v604
        %824 = vmatmul.mubr.bf16.gmra.mxu0 %v603
        %v825 = vpop.f32.mrf.mxu0
        %v826 = vadd.f32 %v512, %v825
        %v827 = vpop.f32.mrf.mxu0
        %v828 = vpop.f32.mrf.mxu0
        %v829 = vadd.f32 %v512, %v828
        %v830 = vpop.f32.mrf.mxu0
        %831 = vmatprep.mubr.bf16.mxu0 %v607
        %832 = vmatmul.mubr.bf16.gmra.mxu0 %v606
        %v833 = vpop.f32.mrf.mxu0
        %v834 = vadd.f32 %v512, %v833
        %v835 = vpop.f32.mrf.mxu0
        %v836 = vpop.f32.mrf.mxu0
        %v837 = vadd.f32 %v512, %v836
        %v838 = vpop.f32.mrf.mxu0
        %839 = vmatprep.mubr.bf16.mxu0 %v610
        %840 = vmatmul.mubr.bf16.gmra.mxu0 %v609
        %v841 = vpop.f32.mrf.mxu0
        %v842 = vadd.f32 %v512, %v841
        %v843 = vpop.f32.mrf.mxu0
        %v844 = vpop.f32.mrf.mxu0
        %v845 = vadd.f32 %v512, %v844
        %v846 = vpop.f32.mrf.mxu0
        %847 = vmatprep.mubr.bf16.mxu0 %v613
        %848 = vmatmul.mubr.bf16.gmra.mxu0 %v612
        %v849 = vpop.f32.mrf.mxu0
        %v850 = vadd.f32 %v512, %v849
        %v851 = vpop.f32.mrf.mxu0
        %v852 = vpop.f32.mrf.mxu0
        %v853 = vadd.f32 %v512, %v852
        %v854 = vpop.f32.mrf.mxu0
        %855 = vmatprep.mubr.bf16.mxu0 %v616
        %856 = vmatmul.mubr.bf16.gmra.mxu0 %v615
        %v857 = vpop.f32.mrf.mxu0
        %v858 = vadd.f32 %v512, %v857
        %v859 = vpop.f32.mrf.mxu0
        %v860 = vpop.f32.mrf.mxu0
        %v861 = vadd.f32 %v512, %v860
        %v862 = vpop.f32.mrf.mxu0
        %863 = vdwg.mxu0
        %864 = vmatprep.subr.bf16.mxu0 0
        %865 = vmatpush1.bf16.msra.mxu0 0
        %866 = vmatprep.subr.bf16.mxu0 0
        %867 = vmatpush1.bf16.msra.mxu0 0
        %868 = vmatprep.subr.bf16.mxu0 0
        %869 = vmatpush1.bf16.msra.mxu0 0
        %870 = vmatprep.subr.bf16.mxu0 0
        %871 = vmatpush1.bf16.msra.mxu0 0
        %872 = vmatprep.subr.bf16.mxu0 0
        %873 = vmatpush1.bf16.msra.mxu0 0
        %874 = vmatprep.subr.bf16.mxu0 0
        %875 = vmatpush1.bf16.msra.mxu0 0
        %876 = vmatprep.subr.bf16.mxu0 0
        %877 = vmatpush1.bf16.msra.mxu0 %v723
        %878 = vmatprep.subr.bf16.mxu0 0
        %879 = vmatpush1.bf16.msra.mxu0 %v722
        %880 = vmatprep.subr.bf16.mxu0 0
        %881 = vmatpush2.bf16.msra.mxu0 0
        %882 = vmatprep.subr.bf16.mxu0 0
        %883 = vmatpush2.bf16.msra.mxu0 0
        %884 = vmatprep.subr.bf16.mxu0 0
        %885 = vmatpush2.bf16.msra.mxu0 0
        %886 = vmatprep.subr.bf16.mxu0 0
        %887 = vmatpush2.bf16.msra.mxu0 0
        %888 = vmatprep.subr.bf16.mxu0 0
        %889 = vmatpush2.bf16.msra.mxu0 0
        %890 = vmatprep.subr.bf16.mxu0 0
        %891 = vmatpush2.bf16.msra.mxu0 0
        %892 = vmatprep.subr.bf16.mxu0 0
        %893 = vmatpush2.bf16.msra.mxu0 0
        %894 = vmatprep.subr.bf16.mxu0 0
        %895 = vmatpush2.bf16.msra.mxu0 0
        %896 = vmatprep.mubr.bf16.mxu0 0
        %897 = vmatmul.mubr.bf16.gmra.mxu0 %v744
        %v898 = vpop.f32.mrf.mxu0
        %v899 = vadd.f32 %v802, %v898
        %v900 = vpop.f32.mrf.mxu0
        %v901 = vpop.f32.mrf.mxu0
        %v902 = vadd.f32 %v805, %v901
        %v903 = vpop.f32.mrf.mxu0
        %904 = vmatprep.mubr.bf16.mxu0 0
        %905 = vmatmul.mubr.bf16.gmra.mxu0 %v747
        %v906 = vpop.f32.mrf.mxu0
        %v907 = vadd.f32 %v810, %v906
        %v908 = vpop.f32.mrf.mxu0
        %v909 = vpop.f32.mrf.mxu0
        %v910 = vadd.f32 %v813, %v909
        %v911 = vpop.f32.mrf.mxu0
        %912 = vmatprep.mubr.bf16.mxu0 0
        %913 = vmatmul.mubr.bf16.gmra.mxu0 %v750
        %v914 = vpop.f32.mrf.mxu0
        %v915 = vadd.f32 %v818, %v914
        %v916 = vpop.f32.mrf.mxu0
        %v917 = vpop.f32.mrf.mxu0
        %v918 = vadd.f32 %v821, %v917
        %v919 = vpop.f32.mrf.mxu0
        %920 = vmatprep.mubr.bf16.mxu0 0
        %921 = vmatmul.mubr.bf16.gmra.mxu0 %v753
        %v922 = vpop.f32.mrf.mxu0
        %v923 = vadd.f32 %v826, %v922
        %v924 = vpop.f32.mrf.mxu0
        %v925 = vpop.f32.mrf.mxu0
        %v926 = vadd.f32 %v829, %v925
        %v927 = vpop.f32.mrf.mxu0
        %928 = vmatprep.mubr.bf16.mxu0 0
        %929 = vmatmul.mubr.bf16.gmra.mxu0 %v756
        %v930 = vpop.f32.mrf.mxu0
        %v931 = vadd.f32 %v834, %v930
        %v932 = vpop.f32.mrf.mxu0
        %v933 = vpop.f32.mrf.mxu0
        %v934 = vadd.f32 %v837, %v933
        %v935 = vpop.f32.mrf.mxu0
        %936 = vmatprep.mubr.bf16.mxu0 0
        %937 = vmatmul.mubr.bf16.gmra.mxu0 %v759
        %v938 = vpop.f32.mrf.mxu0
        %v939 = vadd.f32 %v842, %v938
        %v940 = vpop.f32.mrf.mxu0
        %v941 = vpop.f32.mrf.mxu0
        %v942 = vadd.f32 %v845, %v941
        %v943 = vpop.f32.mrf.mxu0
        %944 = vmatprep.mubr.bf16.mxu0 0
        %945 = vmatmul.mubr.bf16.gmra.mxu0 %v762
        %v946 = vpop.f32.mrf.mxu0
        %v947 = vadd.f32 %v850, %v946
        %v948 = vpop.f32.mrf.mxu0
        %v949 = vpop.f32.mrf.mxu0
        %v950 = vadd.f32 %v853, %v949
        %v951 = vpop.f32.mrf.mxu0
        %952 = vmatprep.mubr.bf16.mxu0 0
        %953 = vmatmul.mubr.bf16.gmra.mxu0 %v765
        %v954 = vpop.f32.mrf.mxu0
        %v955 = vadd.f32 %v858, %v954
        %v956 = vpop.f32.mrf.mxu0
        %v957 = vpop.f32.mrf.mxu0
        %v958 = vadd.f32 %v861, %v957
        %v959 = vpop.f32.mrf.mxu0
        %960 = vdwg.mxu0
        %961 = vst [vmem:[%s419] sm:$0xff] %v899
        %962 = vst [vmem:[%s419 + $0x8] sm:$0xff] %v902
        %963 = vst [vmem:[%s419 + $0x10] sm:$0xff] %v907
        %964 = vst [vmem:[%s419 + $0x18] sm:$0xff] %v910
        %965 = vst [vmem:[%s419 + $0x20] sm:$0xff] %v915
        %966 = vst [vmem:[%s419 + $0x28] sm:$0xff] %v918
        %967 = vst [vmem:[%s419 + $0x30] sm:$0xff] %v923
        %968 = vst [vmem:[%s419 + $0x38] sm:$0xff] %v926
        %969 = vst [vmem:[%s419 + $0x40] sm:$0xff] %v931
        %970 = vst [vmem:[%s419 + $0x48] sm:$0xff] %v934
        %971 = vst [vmem:[%s419 + $0x50] sm:$0xff] %v939
        %972 = vst [vmem:[%s419 + $0x58] sm:$0xff] %v942
        %973 = vst [vmem:[%s419 + $0x60] sm:$0xff] %v947
        %974 = vst [vmem:[%s419 + $0x68] sm:$0xff] %v950
        %975 = vst [vmem:[%s419 + $0x70] sm:$0xff] %v955
        %976 = vst [vmem:[%s419 + $0x78] sm:$0xff] %v958
        %s977 = sand.u32 %s129, 1
        %s978 = sand.u32 %s129, 1
        %s979 = smul.addr %s978, 128
        %s980 = scalar_lea.vmem [#allocation5], %s979
        // Predicated region
        $region74: #{head_forward.1} parent=68 // pred_check
          %p981 = pneg %p139
        $region75: #{head_forward.1} parent=68 // pred_check_branch
          %983 = sbr.rel (%p981) target = $region77
        $region76: #{head_forward.1} parent=68 // pred_region
          %s984 = smul.u32 16, %s25
          %s985 = smul.addr %s984, 5
          %s986 = sadd.s32 %s26, %s985
          %s987 = smul.addr %s986, 8
          %s988 = scalar_lea.vmem %s4, %s987
          // Predicated region
          $region78: #{head_forward.1} parent=76 // pred_check
            _
          $region79: #{head_forward.1} parent=76 // pred_check_branch
            %990 = sbr.rel (0) target = $region81
          $region80: #{head_forward.1} parent=76 // pred_region
            // Predicated region
            $region82: #{head_forward.1} parent=80 // pred_check
              _
            $region83: #{head_forward.1} parent=80 // pred_check_branch
              %992 = sbr.rel (0) target = $region85
            $region84: #{head_forward.1} parent=80 // pred_region
              // Predicated region
              $region97: #{head_forward.1} parent=84 // pred_check
                _
              $region98: #{head_forward.1} parent=84 // pred_check_branch
                %1038 = sbr.rel (0) target = $region100
              $region99: #{head_forward.1} parent=84 // pred_region
                loop: start=0, step=1, limit=1
                $region101: #{head_forward.1} parent=99 // loop_pre_header
                  _
                $region102: #{head_forward.1} parent=99 // loop_header
                  %s1040 = sphi 0, %s1044
                  %p1041 = scmp.ge.s32.totalorder %s1040, 1
                  %s1045 = sphi %s980, %s980
                  %s1046 = sphi %s988, %s988
                $region103: #{head_forward.1} parent=99 // loop_header_branch
                  %1043 = sbr.rel (%p1041) target = $region107
                $region104: #{head_forward.1} parent=99 // loop_body
                  %v1047 = vld [vmem:[%s1045] sm:$0xff]
                  %1048 = vst [vmem:[%s1046] sm:$0xff] %v1047
                  %v1049 = vld [vmem:[%s1045 + $0x8] sm:$0xff]
                  %1050 = vst [vmem:[%s1046 + $0x28] sm:$0xff] %v1049
                  %v1051 = vld [vmem:[%s1045 + $0x10] sm:$0xff]
                  %1052 = vst [vmem:[%s1046 + $0x50] sm:$0xff] %v1051
                  %v1053 = vld [vmem:[%s1045 + $0x18] sm:$0xff]
                  %1054 = vst [vmem:[%s1046 + $0x78] sm:$0xff] %v1053
                  %v1055 = vld [vmem:[%s1045 + $0x20] sm:$0xff]
                  %1056 = vst [vmem:[%s1046 + $0xa0] sm:$0xff] %v1055
                  %v1057 = vld [vmem:[%s1045 + $0x28] sm:$0xff]
                  %1058 = vst [vmem:[%s1046 + $0xc8] sm:$0xff] %v1057
                  %v1059 = vld [vmem:[%s1045 + $0x30] sm:$0xff]
                  %1060 = vst [vmem:[%s1046 + $0xf0] sm:$0xff] %v1059
                  %v1061 = vld [vmem:[%s1045 + $0x38] sm:$0xff]
                  %1062 = vst [vmem:[%s1046 + $0x118] sm:$0xff] %v1061
                  %v1063 = vld [vmem:[%s1045 + $0x40] sm:$0xff]
                  %1064 = vst [vmem:[%s1046 + $0x140] sm:$0xff] %v1063
                  %v1065 = vld [vmem:[%s1045 + $0x48] sm:$0xff]
                  %1066 = vst [vmem:[%s1046 + $0x168] sm:$0xff] %v1065
                  %v1067 = vld [vmem:[%s1045 + $0x50] sm:$0xff]
                  %1068 = vst [vmem:[%s1046 + $0x190] sm:$0xff] %v1067
                  %v1069 = vld [vmem:[%s1045 + $0x58] sm:$0xff]
                  %1070 = vst [vmem:[%s1046 + $0x1b8] sm:$0xff] %v1069
                  %v1071 = vld [vmem:[%s1045 + $0x60] sm:$0xff]
                  %1072 = vst [vmem:[%s1046 + $0x1e0] sm:$0xff] %v1071
                  %v1073 = vld [vmem:[%s1045 + $0x68] sm:$0xff]
                  %1074 = vst [vmem:[%s1046 + $0x208] sm:$0xff] %v1073
                  %v1075 = vld [vmem:[%s1045 + $0x70] sm:$0xff]
                  %1076 = vst [vmem:[%s1046 + $0x230] sm:$0xff] %v1075
                  %v1077 = vld [vmem:[%s1045 + $0x78] sm:$0xff]
                  %1078 = vst [vmem:[%s1046 + $0x258] sm:$0xff] %v1077
                $region105: #{head_forward.1} parent=99 // loop_footer
                  %s1044 = sadd.s32 1, %s1040
                $region106: #{head_forward.1} parent=99 // loop_footer_branch
                  %1039 = sbr.rel target = $region102
                $region107: #{head_forward.1} parent=99 // loop_exit
                  _
              $region100: #{head_forward.1} parent=84 // pred_fallthru
                _
              // Predicated region
              $region108: #{head_forward.1} parent=84 // pred_check
                _
              $region109: #{head_forward.1} parent=84 // pred_check_branch
                %1080 = sbr.rel target = $region111
              $region110: #{head_forward.1} parent=84 // pred_region
                _
              $region111: #{head_forward.1} parent=84 // pred_fallthru
                _
            $region85: #{head_forward.1} parent=80 // pred_fallthru
              _
            // Predicated region
            $region86: #{head_forward.1} parent=80 // pred_check
              _
            $region87: #{head_forward.1} parent=80 // pred_check_branch
              %994 = sbr.rel target = $region89
            $region88: #{head_forward.1} parent=80 // pred_region
              %s996 = ssub.s32 256, 1
              loop: start=0, step=1, limit=1
              $region90: #{head_forward.1} parent=88 // loop_pre_header
                _
              $region91: #{head_forward.1} parent=88 // loop_header
                %s998 = sphi 0, %s1002
                %p999 = scmp.ge.s32.totalorder %s998, 1
                %s1003 = sphi %s980, %s980
                %s1004 = sphi %s988, %s988
              $region92: #{head_forward.1} parent=88 // loop_header_branch
                %1001 = sbr.rel (%p999) target = $region96
              $region93: #{head_forward.1} parent=88 // loop_body
                %v1005 = vld [vmem:[%s1003] sm:%s996]
                %1006 = vst [vmem:[%s1004] sm:%s996] %v1005
                %v1007 = vld [vmem:[%s1003 + $0x8] sm:%s996]
                %1008 = vst [vmem:[%s1004 + $0x28] sm:%s996] %v1007
                %v1009 = vld [vmem:[%s1003 + $0x10] sm:%s996]
                %1010 = vst [vmem:[%s1004 + $0x50] sm:%s996] %v1009
                %v1011 = vld [vmem:[%s1003 + $0x18] sm:%s996]
                %1012 = vst [vmem:[%s1004 + $0x78] sm:%s996] %v1011
                %v1013 = vld [vmem:[%s1003 + $0x20] sm:%s996]
                %1014 = vst [vmem:[%s1004 + $0xa0] sm:%s996] %v1013
                %v1015 = vld [vmem:[%s1003 + $0x28] sm:%s996]
                %1016 = vst [vmem:[%s1004 + $0xc8] sm:%s996] %v1015
                %v1017 = vld [vmem:[%s1003 + $0x30] sm:%s996]
                %1018 = vst [vmem:[%s1004 + $0xf0] sm:%s996] %v1017
                %v1019 = vld [vmem:[%s1003 + $0x38] sm:%s996]
                %1020 = vst [vmem:[%s1004 + $0x118] sm:%s996] %v1019
                %v1021 = vld [vmem:[%s1003 + $0x40] sm:%s996]
                %1022 = vst [vmem:[%s1004 + $0x140] sm:%s996] %v1021
                %v1023 = vld [vmem:[%s1003 + $0x48] sm:%s996]
                %1024 = vst [vmem:[%s1004 + $0x168] sm:%s996] %v1023
                %v1025 = vld [vmem:[%s1003 + $0x50] sm:%s996]
                %1026 = vst [vmem:[%s1004 + $0x190] sm:%s996] %v1025
                %v1027 = vld [vmem:[%s1003 + $0x58] sm:%s996]
                %1028 = vst [vmem:[%s1004 + $0x1b8] sm:%s996] %v1027
                %v1029 = vld [vmem:[%s1003 + $0x60] sm:%s996]
                %1030 = vst [vmem:[%s1004 + $0x1e0] sm:%s996] %v1029
                %v1031 = vld [vmem:[%s1003 + $0x68] sm:%s996]
                %1032 = vst [vmem:[%s1004 + $0x208] sm:%s996] %v1031
                %v1033 = vld [vmem:[%s1003 + $0x70] sm:%s996]
                %1034 = vst [vmem:[%s1004 + $0x230] sm:%s996] %v1033
                %v1035 = vld [vmem:[%s1003 + $0x78] sm:%s996]
                %1036 = vst [vmem:[%s1004 + $0x258] sm:%s996] %v1035
              $region94: #{head_forward.1} parent=88 // loop_footer
                %s1002 = sadd.s32 1, %s998
              $region95: #{head_forward.1} parent=88 // loop_footer_branch
                %997 = sbr.rel target = $region91
              $region96: #{head_forward.1} parent=88 // loop_exit
                _
            $region89: #{head_forward.1} parent=80 // pred_fallthru
              _
          $region81: #{head_forward.1} parent=76 // pred_fallthru
            _
          %1081 = vnop
        $region77: #{head_forward.1} parent=68 // pred_fallthru
          _
      $region69: #{head_forward.1} parent=5 // pred_fallthru
        _
      %p1082 = scmp.le.s32.totalorder 2, %s16
      // Predicated region
      $region112: #{head_forward.1} parent=5 // pred_check
        %p1083 = pneg %p1082
      $region113: #{head_forward.1} parent=5 // pred_check_branch
        %1085 = sbr.rel (%p1083) target = $region115
      $region114: #{head_forward.1} parent=5 // pred_region
        %s1086 = ssub.s32 %s16, 2
        // Predicated region
        $region116: #{head_forward.1} parent=114 // pred_check
          %p1087 = pneg %p145
        $region117: #{head_forward.1} parent=114 // pred_check_branch
          %1089 = sbr.rel (%p1087) target = $region119
        $region118: #{head_forward.1} parent=114 // pred_region
          %s1090 = sand.u32 %s130, 1
          %s1091 = sand.u32 %s130, 1
          %s1092 = smul.addr %s1091, 128
          %s1093 = scalar_lea.vmem [#allocation5], %s1092
        $region119: #{head_forward.1} parent=114 // pred_fallthru
          _
      $region115: #{head_forward.1} parent=5 // pred_fallthru
        _
    $region6: #{head_forward.1} parent=1 // loop_footer
      %s20 = sadd.s32 1, %s16
    $region7: #{head_forward.1} parent=1 // loop_footer_branch
      %15 = sbr.rel target = $region3
    $region8: #{head_forward.1} parent=1 // loop_exit
      _

</llo_original>
